<compile_context>
chip_gen: v6e
topology: v6e:2x2x1
jax: 0.10.0
libtpu: 0.0.40
codegen_flags: <defaults>
</compile_context>

<pallas_src>
from typing import NamedTuple

import numpy as np
import jax
import jax.numpy as jnp
from jax.experimental import pallas as pl
from jax.experimental.pallas import tpu as pltpu


_LANE = 128
_SUBLANE = 8
_NEG_BIG = -1e30      # bias for padded class columns -> exp() underflows to 0


def _round_up(n, m):
    return ((n + m - 1) // m) * m


def _vmem_capacity_bytes():
    """Per-generation physical VMEM (v5e/v6e: 128 MiB, v7x: 64 MiB)."""
    try:
        info = pltpu.get_tpu_info()
        return int(getattr(info, "vmem_capacity_bytes", 64 << 20))
    except Exception:
        return 64 << 20     # conservative (v7x-sized) fallback


# ----------------------------------------------------------------------------
# Pallas kernel: Linear+ReLU, Linear, softmax, fused [cls | crowd] pack matmul
# ----------------------------------------------------------------------------
def base_model_kernel(x_ref, w1_ref, b1_ref, w2_ref, b2_ref, wc_ref, out_ref):
    # classifier: Linear(D, E) -> ReLU.  x arrives f32 (no host pre-pass) and
    # is cast to bf16 in-kernel (cheap VPU op) so the MXU runs at bf16 rate;
    # accumulation is f32.
    x = x_ref[...].astype(jnp.bfloat16)                              # [TB, D]
    h = jnp.dot(x, w1_ref[...], preferred_element_type=jnp.float32) + b1_ref[...]
    h = jnp.maximum(h, 0.0)                                          # [TB, E_pad] f32

    # TODO(synk): nn.Dropout is stochastic at train time; eval-mode identity here.

    # classifier: Linear(E, C).  Padded class columns carry a -1e30 bias (kept
    # f32) so they vanish under softmax; padded rows of W2 are zero.
    logits = jnp.dot(h.astype(jnp.bfloat16), w2_ref[...],
                     preferred_element_type=jnp.float32) + b2_ref[...]   # [TB, C_pad]

    # Softmax(dim=1) in f32 with an exact divide (calibrated probabilities).
    m = jnp.max(logits, axis=1, keepdims=True)
    e = jnp.exp(logits - m)
    cls = e / jnp.sum(e, axis=1, keepdims=True)                      # [TB, C_pad] f32

    # Fused output: a single f32 matmul against [I_C | kernel.reshape(C, C*R)]
    # (zero-padded to P lanes) emits cls in lanes [0, C) and the crowd head in
    # lanes [C, C + C*R) as one lane-dense tile -> one unmasked store.
    out_ref[...] = jnp.dot(cls, wc_ref[...],
                           preferred_element_type=jnp.float32).astype(out_ref.dtype)


# ----------------------------------------------------------------------------
# One-time (model-load) parameter preparation — hoisted out of the forward path
# ----------------------------------------------------------------------------
class Prepared(NamedTuple):
    w1: jax.Array          # (D, E_pad)   bf16
    b1: jax.Array          # (1, E_pad)   f32
    w2: jax.Array          # (E_pad, C_pad) bf16
    b2: jax.Array          # (1, C_pad)   f32 (-1e30 padded)
    wc: jax.Array          # (C_pad, P)   f32  [I_C | kernel.reshape(C, C*R)]
    input_dims: int
    emb_dim: int
    num_class: int
    num_annotators: int


def prepare_params(w1, b1, w2, b2, crowd_kernel):
    """Pad/cast the weights into kernel layouts once at model load."""
    D, E = w1.shape
    C, _, R = crowd_kernel.shape
    CR = C * R
    E_pad = _round_up(E, _LANE)
    C_pad = _round_up(C, _LANE)
    P = _round_up(C + CR, _LANE)

    w1_p = jnp.zeros((D, E_pad), jnp.bfloat16).at[:, :E].set(w1.astype(jnp.bfloat16))
    b1_p = jnp.zeros((1, E_pad), jnp.float32).at[0, :E].set(b1.astype(jnp.float32))
    w2_p = jnp.zeros((E_pad, C_pad), jnp.bfloat16).at[:E, :C].set(w2.astype(jnp.bfloat16))
    b2_p = jnp.full((1, C_pad), _NEG_BIG, jnp.float32).at[0, :C].set(b2.astype(jnp.float32))

    # Combined [identity | crowd-kernel] matrix, kept f32 so the probability
    # pass-through is exact and the crowd head avoids bf16 rounding.
    wc_p = jnp.zeros((C_pad, P), jnp.float32)
    wc_p = wc_p.at[:C, :C].set(jnp.eye(C, dtype=jnp.float32))
    wc_p = wc_p.at[:C, C:C + CR].set(crowd_kernel.reshape(C, CR).astype(jnp.float32))

    return Prepared(w1_p, b1_p, w2_p, b2_p, wc_p, D, E, C, R)


# ----------------------------------------------------------------------------
# Batch-tile selection
# ----------------------------------------------------------------------------
def _choose_batch_tile(B, D, E_pad, C_pad, P, budget_bytes):
    """Largest multiple-of-8 batch tile (<= 2048) that keeps double-buffered
    streamed tiles + resident weights + f32 temps under the per-generation VMEM
    budget, then capped so the grid has >= 2 steps when the batch allows
    (v7x megacore sharding)."""
    # resident weights, conservatively counted double-buffered
    weights = 2 * (D * E_pad * 2 + E_pad * 4 + E_pad * C_pad * 2 + C_pad * 4
                   + C_pad * P * 4)
    # per batch-row: double-buffered f32 x tile + packed f32 out tile,
    # plus f32 intermediates (h, logits/cls, packed result)
    per_row = 2 * (D * 4 + P * 4) + (E_pad + C_pad + P) * 4
    avail = max(budget_bytes - weights, per_row * _SUBLANE)
    tb = int((avail // per_row) // _SUBLANE * _SUBLANE)
    tb = max(_SUBLANE, min(2048, tb))

    B8 = _round_up(B, _SUBLANE)
    tb = min(tb, B8)
    if B8 >= 2 * _SUBLANE:
        # guarantee at least 2 grid steps so both v7x TensorCores get work
        tb = min(tb, _round_up(-(-B8 // 2), _SUBLANE))
    return max(_SUBLANE, (tb // _SUBLANE) * _SUBLANE)


# ----------------------------------------------------------------------------
# Forward
# ----------------------------------------------------------------------------
def base_model_forward(x, params: Prepared):
    """x: [B, ...] (flattened inside).  Returns (cls_out [B,C], crowd_out [B,C,R])."""
    B = x.shape[0]
    x2d = x.reshape(B, -1).astype(jnp.float32)      # torch x.view(B, -1); stays f32
    D = x2d.shape[1]
    assert D == params.input_dims
    C, R = params.num_class, params.num_annotators
    CR = C * R
    E_pad = params.w1.shape[1]
    C_pad = params.w2.shape[1]
    P = params.wc.shape[1]

    vmem_cap = _vmem_capacity_bytes()
    TB = _choose_batch_tile(B, D, E_pad, C_pad, P,
                            budget_bytes=int(0.45 * vmem_cap))
    B_pad = _round_up(B, TB)
    if B_pad != B:
        # pad only the ragged batch tail (no cast, f32 layout preserved)
        x2d = jnp.zeros((B_pad, D), x2d.dtype).at[:B].set(x2d)

    grid = (B_pad // TB,)
    resident = lambda i: (0, 0)     # weights resident in VMEM across batch tiles
    streamed = lambda i: (i, 0)

    # VMEM estimate: double-buffered streamed tiles + (conservatively doubled)
    # resident weights + f32 intermediates; x2 headroom, capped at 90% of the
    # queried physical VMEM for this TPU generation.
    tile_io = TB * D * 4 + TB * P * 4
    weights = 2 * (D * E_pad * 2 + E_pad * 4 + E_pad * C_pad * 2 + C_pad * 4
                   + C_pad * P * 4)
    temps = TB * (E_pad + C_pad + P) * 4
    est = 2 * tile_io + weights + temps
    vmem_bytes = int(min(max(2 * est, 32 << 20), int(0.9 * vmem_cap)))

    # TODO(synk): for very large input_dims, add a K (D) grid axis marked
    # "arbitrary" with an f32 accumulator instead of keeping W1 fully resident.
    packed = pl.pallas_call(
        base_model_kernel,
        grid=grid,
        in_specs=[
            pl.BlockSpec((TB, D), streamed),          # x (f32, cast in-kernel)
            pl.BlockSpec((D, E_pad), resident),       # W1 (bf16)
            pl.BlockSpec((1, E_pad), resident),       # b1 (f32)
            pl.BlockSpec((E_pad, C_pad), resident),   # W2 (bf16)
            pl.BlockSpec((1, C_pad), resident),       # b2 (f32, -1e30 padded)
            pl.BlockSpec((C_pad, P), resident),       # [I | crowd kernel] (f32)
        ],
        out_specs=pl.BlockSpec((TB, P), streamed),
        out_shape=jax.ShapeDtypeStruct((B_pad, P), jnp.float32),
        compiler_params=pltpu.CompilerParams(
            dimension_semantics=("parallel",),
            vmem_limit_bytes=vmem_bytes),
    )(x2d, params.w1, params.b1, params.w2, params.b2, params.wc)

    # Split the single packed slab (half the bytes of two padded outputs);
    # consumers that accept the packed layout can skip this entirely.
    cls_out = packed[:B, :C]
    crowd_out = packed[:B, C:C + CR].reshape(B, C, R)
    return cls_out, crowd_out


# ----------------------------------------------------------------------------
# Deterministic parameter init (matches module __init__ shapes)
# ----------------------------------------------------------------------------
def init_identities(num_class, num_annotators):
    out = np.zeros((num_class, num_class, num_annotators), dtype=np.float32)
    for r in range(num_annotators):
        for i in range(num_class):
            out[i, i, r] = 2.0
    return jnp.asarray(out)


def make_params(key, input_dims, emb_dim, num_class, num_annotators):
    k1, k2, k3, k4 = jax.random.split(key, 4)
    # nn.Linear default init: U(-1/sqrt(fan_in), 1/sqrt(fan_in))
    lim1 = 1.0 / np.sqrt(input_dims)
    lim2 = 1.0 / np.sqrt(emb_dim)
    w1 = jax.random.uniform(k1, (input_dims, emb_dim), jnp.float32, -lim1, lim1)
    b1 = jax.random.uniform(k2, (emb_dim,), jnp.float32, -lim1, lim1)
    w2 = jax.random.uniform(k3, (emb_dim, num_class), jnp.float32, -lim2, lim2)
    b2 = jax.random.uniform(k4, (num_class,), jnp.float32, -lim2, lim2)
    crowd_kernel = init_identities(num_class, num_annotators)
    return w1, b1, w2, b2, crowd_kernel


def reference_forward(x, w1, b1, w2, b2, crowd_kernel):
    B = x.shape[0]
    x2d = x.reshape(B, -1)
    h = jnp.maximum(x2d @ w1 + b1, 0.0)
    logits = h @ w2 + b2
    cls = jax.nn.softmax(logits, axis=1)
    crowd = jnp.einsum('ij,jkl->ikl', cls, crowd_kernel)
    return cls, crowd


if __name__ == "__main__":
    # small shapes: batch=2, x is NCHW [2, 4, 4, 4] -> input_dims=64
    B, Cin, H, W = 2, 4, 4, 4
    input_dims = Cin * H * W          # 64
    emb_dim = 32
    num_class = 10
    num_annotators = 8

    key = jax.random.PRNGKey(0)
    kx, kp = jax.random.split(key)
    x = jax.random.normal(kx, (B, Cin, H, W), jnp.float32)
    w1, b1, w2, b2, crowd_kernel = make_params(
        kp, input_dims, emb_dim, num_class, num_annotators)

    # weight prep hoisted out of the per-call forward path (model-load time)
    prepared = prepare_params(w1, b1, w2, b2, crowd_kernel)

    cls_out, crowd_out = base_model_forward(x, prepared)
    jax.block_until_ready((cls_out, crowd_out))

    # correctness check against pure-JAX f32 reference (bf16 matmul inputs in
    # the kernel -> moderately loosened tolerance).
    cls_ref, crowd_ref = reference_forward(x, w1, b1, w2, b2, crowd_kernel)
    assert cls_out.shape == (B, num_class)
    assert crowd_out.shape == (B, num_class, num_annotators)
    np.testing.assert_allclose(np.asarray(cls_out), np.asarray(cls_ref),
                               rtol=5e-2, atol=2e-2)
    np.testing.assert_allclose(np.asarray(crowd_out), np.asarray(crowd_ref),
                               rtol=5e-2, atol=2e-2)

    print("KERNEL_OK")
</pallas_src>

<mosaic_0001>
module attributes {stable_mosaic.version = 11 : i64} {
  func.func @base_model_kernel(%arg0: i32, %arg1: memref<8x64xf32, #tpu.memory_space<vmem>>, %arg2: memref<64x128xbf16, #tpu.memory_space<vmem>>, %arg3: memref<1x128xf32, #tpu.memory_space<vmem>>, %arg4: memref<128x128xbf16, #tpu.memory_space<vmem>>, %arg5: memref<1x128xf32, #tpu.memory_space<vmem>>, %arg6: memref<128x128xf32, #tpu.memory_space<vmem>>, %arg7: memref<8x128xf32, #tpu.memory_space<vmem>>) attributes {dimension_semantics = [#tpu.dimension_semantics<parallel>], iteration_bounds = array<i64: 1>, scalar_prefetch = 0 : i64, scratch_operands = 0 : i64, tpu.core_type = #tpu.core_type<tc>, window_params = [{transform_indices = @transform_0, window_bounds = array<i64: 8, 64>}, {pipeline_mode = #tpu.pipeline_mode<synchronous>, transform_indices = @transform_1, window_bounds = array<i64: 64, 128>}, {pipeline_mode = #tpu.pipeline_mode<synchronous>, transform_indices = @transform_2, window_bounds = array<i64: 1, 128>}, {pipeline_mode = #tpu.pipeline_mode<synchronous>, transform_indices = @transform_3, window_bounds = array<i64: 128, 128>}, {pipeline_mode = #tpu.pipeline_mode<synchronous>, transform_indices = @transform_4, window_bounds = array<i64: 1, 128>}, {pipeline_mode = #tpu.pipeline_mode<synchronous>, transform_indices = @transform_5, window_bounds = array<i64: 128, 128>}, {transform_indices = @transform_6, window_bounds = array<i64: 8, 128>}]} {
    %c0 = arith.constant 0 : index
    %c0_0 = arith.constant 0 : index
    %0 = vector.load %arg1[%c0, %c0_0] : memref<8x64xf32, #tpu.memory_space<vmem>>, vector<8x64xf32>
    %1 = arith.truncf %0 : vector<8x64xf32> to vector<8x64xbf16>
    %c0_1 = arith.constant 0 : index
    %c0_2 = arith.constant 0 : index
    %2 = vector.load %arg2[%c0_1, %c0_2] : memref<64x128xbf16, #tpu.memory_space<vmem>>, vector<64x128xbf16>
    %cst = arith.constant dense<0.000000e+00> : vector<8x128xf32>
    %3 = tpu.matmul %1, %2, %cst {dimension_numbers = #tpu.dot_dimension_numbers<[1], [0], [0], [1], [0, 0, 1, 1], [], []>} : vector<8x64xbf16>, vector<64x128xbf16>, vector<8x128xf32> -> vector<8x128xf32>
    %c0_3 = arith.constant 0 : index
    %c0_4 = arith.constant 0 : index
    %4 = vector.load %arg3[%c0_3, %c0_4] : memref<1x128xf32, #tpu.memory_space<vmem>>, vector<1x128xf32>
    %5 = vector.broadcast %4 : vector<1x128xf32> to vector<8x128xf32>
    %6 = arith.addf %3, %5 : vector<8x128xf32>
    %cst_5 = arith.constant 0.000000e+00 : f32
    %7 = vector.broadcast %cst_5 : f32 to vector<8x128xf32>
    %8 = arith.maximumf %6, %7 : vector<8x128xf32>
    %9 = arith.truncf %8 : vector<8x128xf32> to vector<8x128xbf16>
    %c0_6 = arith.constant 0 : index
    %c0_7 = arith.constant 0 : index
    %10 = vector.load %arg4[%c0_6, %c0_7] : memref<128x128xbf16, #tpu.memory_space<vmem>>, vector<128x128xbf16>
    %cst_8 = arith.constant dense<0.000000e+00> : vector<8x128xf32>
    %11 = tpu.matmul %9, %10, %cst_8 {dimension_numbers = #tpu.dot_dimension_numbers<[1], [0], [0], [1], [0, 0, 1, 1], [], []>} : vector<8x128xbf16>, vector<128x128xbf16>, vector<8x128xf32> -> vector<8x128xf32>
    %c0_9 = arith.constant 0 : index
    %c0_10 = arith.constant 0 : index
    %12 = vector.load %arg5[%c0_9, %c0_10] : memref<1x128xf32, #tpu.memory_space<vmem>>, vector<1x128xf32>
    %13 = vector.broadcast %12 : vector<1x128xf32> to vector<8x128xf32>
    %14 = arith.addf %11, %13 : vector<8x128xf32>
    %cst_11 = arith.constant dense<0xFF800000> : vector<8xf32>
    %15 = vector.multi_reduction <maximumf>, %14, %cst_11 [1] : vector<8x128xf32> to vector<8xf32>
    %16 = vector.shape_cast %15 : vector<8xf32> to vector<8x1xf32>
    %17 = vector.broadcast %16 : vector<8x1xf32> to vector<8x128xf32>
    %18 = arith.subf %14, %17 : vector<8x128xf32>
    %19 = math.exp %18 : vector<8x128xf32>
    %cst_12 = arith.constant dense<0.000000e+00> : vector<8xf32>
    %20 = vector.multi_reduction <add>, %19, %cst_12 [1] : vector<8x128xf32> to vector<8xf32>
    %21 = vector.shape_cast %20 : vector<8xf32> to vector<8x1xf32>
    %22 = vector.broadcast %21 : vector<8x1xf32> to vector<8x128xf32>
    %23 = arith.divf %19, %22 : vector<8x128xf32>
    %c0_13 = arith.constant 0 : index
    %c0_14 = arith.constant 0 : index
    %24 = vector.load %arg6[%c0_13, %c0_14] : memref<128x128xf32, #tpu.memory_space<vmem>>, vector<128x128xf32>
    %cst_15 = arith.constant dense<0.000000e+00> : vector<8x128xf32>
    %25 = tpu.matmul %23, %24, %cst_15 {dimension_numbers = #tpu.dot_dimension_numbers<[1], [0], [0], [1], [0, 0, 1, 1], [], []>} : vector<8x128xf32>, vector<128x128xf32>, vector<8x128xf32> -> vector<8x128xf32>
    %c0_16 = arith.constant 0 : index
    %c0_17 = arith.constant 0 : index
    %26 = vector.load %arg7[%c0_16, %c0_17] : memref<8x128xf32, #tpu.memory_space<vmem>>, vector<8x128xf32>
    tpu.vector_store %arg7[%c0_16, %c0_17], %25 {strides = array<i32>} : memref<8x128xf32, #tpu.memory_space<vmem>>, vector<8x128xf32>,
    return
  }
  func.func @transform_0(%arg0: i32) -> (i32, i32) {
    %c0_i32 = arith.constant 0 : i32
    %c0_i32_0 = arith.constant 0 : i32
    return %arg0, %c0_i32 : i32, i32
  }
  func.func @transform_1(%arg0: i32) -> (i32, i32) {
    %c0_i32 = arith.constant 0 : i32
    %c0_i32_0 = arith.constant 0 : i32
    %c0_i32_1 = arith.constant 0 : i32
    return %c0_i32, %c0_i32_0 : i32, i32
  }
  func.func @transform_2(%arg0: i32) -> (i32, i32) {
    %c0_i32 = arith.constant 0 : i32
    %c0_i32_0 = arith.constant 0 : i32
    %c0_i32_1 = arith.constant 0 : i32
    return %c0_i32, %c0_i32_0 : i32, i32
  }
  func.func @transform_3(%arg0: i32) -> (i32, i32) {
    %c0_i32 = arith.constant 0 : i32
    %c0_i32_0 = arith.constant 0 : i32
    %c0_i32_1 = arith.constant 0 : i32
    return %c0_i32, %c0_i32_0 : i32, i32
  }
  func.func @transform_4(%arg0: i32) -> (i32, i32) {
    %c0_i32 = arith.constant 0 : i32
    %c0_i32_0 = arith.constant 0 : i32
    %c0_i32_1 = arith.constant 0 : i32
    return %c0_i32, %c0_i32_0 : i32, i32
  }
  func.func @transform_5(%arg0: i32) -> (i32, i32) {
    %c0_i32 = arith.constant 0 : i32
    %c0_i32_0 = arith.constant 0 : i32
    %c0_i32_1 = arith.constant 0 : i32
    return %c0_i32, %c0_i32_0 : i32, i32
  }
  func.func @transform_6(%arg0: i32) -> (i32, i32) {
    %c0_i32 = arith.constant 0 : i32
    %c0_i32_0 = arith.constant 0 : i32
    return %arg0, %c0_i32 : i32, i32
  }
}

</mosaic_0001>

<llo_original>
// kernel: tpu_custom_call.1
$region0: #{tpu_custom_call.1}
  #allocation0 [shape = 'u32[]', space=smem, size = 0x4, offset = 0x4, fixed_abs, tag = 'smem constant byte address 0x4 - core index']
  #allocation1 [shape = 'u32[144,128]{1,0:T(1,128)}', space=vmem, size = 0x12000, scoped, tag = 'internal scratch']
  %s0 = inlined_call_operand.hbm [shape: f32[8,64], index: 0, kind: input, shape index: {}]
  %s1 = inlined_call_operand.hbm [shape: bf16[64,128], index: 1, kind: input, shape index: {}]
  %s2 = inlined_call_operand.vmem [shape: f32[1,128], index: 2, kind: input, shape index: {}]
  %s3 = inlined_call_operand.hbm [shape: bf16[128,128], index: 3, kind: input, shape index: {}]
  %s4 = inlined_call_operand.vmem [shape: f32[1,128], index: 4, kind: input, shape index: {}]
  %s5 = inlined_call_operand.hbm [shape: f32[128,128], index: 5, kind: input, shape index: {}]
  %s6 = inlined_call_operand.hbm [shape: f32[8,128], index: 6, kind: output, shape index: {}]
  %s7 = sld [smem:[#allocation0]]
  $region50: #{tpu_custom_call.1} parent=0
    _
  %s9 = ssub.s32 1, %s7
  %s10 = scalar_select 0, %s9, %s7
  $region1: #{tpu_custom_call.1} parent=0
    #allocation2 [shape = 'u8[4096]{0}', space=vmem, size = 0x1000, scoped, tag = 'input window, operand 0, single buffered']
    #allocation3 [shape = 's32[1]{0}', space=sflag, size = 0x4, scoped, tag = 'scoped memory for tpu_custom_call.1']
    #allocation4 [shape = 's32[1]{0}', space=sflag, size = 0x4, scoped, tag = 'scoped memory for tpu_custom_call.1']
    #allocation5 [shape = 'u8[16384]{0}', space=vmem, size = 0x4000, scoped, tag = 'input window, operand 1, single buffered']
    #allocation6 [shape = 's32[1]{0}', space=sflag, size = 0x4, scoped, tag = 'scoped memory for tpu_custom_call.1']
    #allocation7 [shape = 'u8[32768]{0}', space=vmem, size = 0x8000, scoped, tag = 'input window, operand 3, single buffered']
    #allocation8 [shape = 'u8[65536]{0}', space=vmem, size = 0x10000, scoped, tag = 'input window, operand 5, single buffered']
    #allocation9 [shape = 's32[1]{0}', space=sflag, size = 0x4, scoped, tag = 'scoped memory for tpu_custom_call.1']
    #allocation10 [shape = 'u8[4096]{0}', space=vmem, size = 0x1000, scoped, tag = 'output window, operand 0, single buffered']
    %11 = vsyncpa [#allocation3], 0
    %12 = vsyncpa [#allocation6], 0
    %13 = vsyncpa [#allocation9], 0
    %14 = vsyncpa [#allocation4], 0
    // Predicated region
    $region2: #{tpu_custom_call.1} parent=1 // pred_check
      _
    $region3: #{tpu_custom_call.1} parent=1 // pred_check_branch
      %16 = sbr.rel (0) target = $region5
    $region4: #{tpu_custom_call.1} parent=1 // pred_region
      %s18 = ssub.s32 128, 128
      %19 = vsyncadd [#allocation3], %s18
      %s21 = sshll.u32 [#allocation2], 4
      %s22 = int_to_ptr.vmem [resolvable:$true] %s21
      %24 = dma.hbm_to_vmem [thread:$0]  %s0, 128, %s22, [#allocation3]
    $region5: #{tpu_custom_call.1} parent=1 // pred_fallthru
      _
    // Predicated region
    $region6: #{tpu_custom_call.1} parent=1 // pred_check
      _
    $region7: #{tpu_custom_call.1} parent=1 // pred_check_branch
      %26 = sbr.rel (0) target = $region9
    $region8: #{tpu_custom_call.1} parent=1 // pred_region
      %s28 = ssub.s32 512, 512
      %29 = vsyncadd [#allocation6], %s28
      %s30 = sshll.u32 [#allocation5], 4
      %s31 = int_to_ptr.vmem [resolvable:$true] %s30
      %36 = dma.hbm_to_vmem [thread:$0]  %s1, 512, %s31, [#allocation6], 64, 64, 4
    $region9: #{tpu_custom_call.1} parent=1 // pred_fallthru
      _
    // Predicated region
    $region10: #{tpu_custom_call.1} parent=1 // pred_check
      _
    $region11: #{tpu_custom_call.1} parent=1 // pred_check_branch
      %38 = sbr.rel (0) target = $region13
    $region12: #{tpu_custom_call.1} parent=1 // pred_region
      _
    $region13: #{tpu_custom_call.1} parent=1 // pred_fallthru
      _
    // Predicated region
    $region14: #{tpu_custom_call.1} parent=1 // pred_check
      _
    $region15: #{tpu_custom_call.1} parent=1 // pred_check_branch
      %40 = sbr.rel (0) target = $region17
    $region16: #{tpu_custom_call.1} parent=1 // pred_region
      %s42 = ssub.s32 1024, 1024
      %43 = vsyncadd [#allocation6], %s42
      %s44 = sshll.u32 [#allocation7], 4
      %s45 = int_to_ptr.vmem [resolvable:$true] %s44
      %50 = dma.hbm_to_vmem [thread:$0]  %s3, 1024, %s45, [#allocation6], 64, 64, 4
    $region17: #{tpu_custom_call.1} parent=1 // pred_fallthru
      _
    // Predicated region
    $region18: #{tpu_custom_call.1} parent=1 // pred_check
      _
    $region19: #{tpu_custom_call.1} parent=1 // pred_check_branch
      %52 = sbr.rel (0) target = $region21
    $region20: #{tpu_custom_call.1} parent=1 // pred_region
      _
    $region21: #{tpu_custom_call.1} parent=1 // pred_fallthru
      _
    // Predicated region
    $region22: #{tpu_custom_call.1} parent=1 // pred_check
      _
    $region23: #{tpu_custom_call.1} parent=1 // pred_check_branch
      %54 = sbr.rel (0) target = $region25
    $region24: #{tpu_custom_call.1} parent=1 // pred_region
      %s56 = ssub.s32 2048, 2048
      %57 = vsyncadd [#allocation9], %s56
      %s58 = sshll.u32 [#allocation8], 4
      %s59 = int_to_ptr.vmem [resolvable:$true] %s58
      %64 = dma.hbm_to_vmem [thread:$0]  %s5, 2048, %s59, [#allocation9], 128, 128, 8
    $region25: #{tpu_custom_call.1} parent=1 // pred_fallthru
      _
    // Predicated region
    $region26: #{tpu_custom_call.1} parent=1 // pred_check
      _
    $region27: #{tpu_custom_call.1} parent=1 // pred_check_branch
      %66 = sbr.rel (0) target = $region29
    $region28: #{tpu_custom_call.1} parent=1 // pred_region
      %67 = dma.done [#allocation3], 128
    $region29: #{tpu_custom_call.1} parent=1 // pred_fallthru
      _
    // Predicated region
    $region30: #{tpu_custom_call.1} parent=1 // pred_check
      _
    $region31: #{tpu_custom_call.1} parent=1 // pred_check_branch
      %69 = sbr.rel (0) target = $region33
    $region32: #{tpu_custom_call.1} parent=1 // pred_region
      %70 = dma.done [#allocation6], 512
    $region33: #{tpu_custom_call.1} parent=1 // pred_fallthru
      _
    // Predicated region
    $region34: #{tpu_custom_call.1} parent=1 // pred_check
      _
    $region35: #{tpu_custom_call.1} parent=1 // pred_check_branch
      %72 = sbr.rel (0) target = $region37
    $region36: #{tpu_custom_call.1} parent=1 // pred_region
      %73 = dma.done [#allocation6], 1024
    $region37: #{tpu_custom_call.1} parent=1 // pred_fallthru
      _
    // Predicated region
    $region38: #{tpu_custom_call.1} parent=1 // pred_check
      _
    $region39: #{tpu_custom_call.1} parent=1 // pred_check_branch
      %75 = sbr.rel (0) target = $region41
    $region40: #{tpu_custom_call.1} parent=1 // pred_region
      %76 = dma.done [#allocation9], 2048
    $region41: #{tpu_custom_call.1} parent=1 // pred_fallthru
      _
    %v78 = vld [vmem:[#allocation2] sm:$0xff]
    %v79 = vpack.c.bf16 %v78, %v78
    %v80 = vld [vmem:[#allocation5] sm:$0xf]
    %v81 = vld [vmem:[#allocation5 + $0x4] sm:$0xf]
    %v82 = vld [vmem:[#allocation5 + $0x8] sm:$0xf]
    %v83 = vld [vmem:[#allocation5 + $0xc] sm:$0xf]
    %v84 = vld [vmem:[#allocation5 + $0x10] sm:$0xf]
    %v85 = vld [vmem:[#allocation5 + $0x14] sm:$0xf]
    %v86 = vld [vmem:[#allocation5 + $0x18] sm:$0xf]
    %v87 = vld [vmem:[#allocation5 + $0x1c] sm:$0xf]
    %v88 = vld [vmem:[%s2] sm:$0x1]
    %v90 = vlaneseq
    %v91 = vshrl.u32 %v90, 7
    %v92 = vsub.s32 0, %v91
    %v93 = vrot.slane %v88, %v92
    %v103 = vunpack.c.l.b16 %v80
    %v104 = vunpack.c.l.b16 %v81
    %v105 = vunpack.c.l.b16 %v82
    %v106 = vunpack.c.l.b16 %v83
    %v107 = vunpack.c.l.b16 %v84
    %v108 = vunpack.c.l.b16 %v85
    %v109 = vunpack.c.l.b16 %v86
    %v110 = vunpack.c.l.b16 %v87
    %v111 = vpack.c.b16 %v104, %v103
    %v112 = vpack.c.b16 %v106, %v105
    %v113 = vpack.c.b16 %v108, %v107
    %v114 = vpack.c.b16 %v110, %v109
    %vm119 = vcmask 523264
    %v121 = vsel %vm119, %v79, 0
    %123 = vmatprep.subr.bf16.mxu0 0
    %124 = vmatpush1.bf16.msra.mxu0 0
    %125 = vmatprep.subr.bf16.mxu0 0
    %126 = vmatpush1.bf16.msra.mxu0 0
    %127 = vmatprep.subr.bf16.mxu0 0
    %128 = vmatpush1.bf16.msra.mxu0 0
    %129 = vmatprep.subr.bf16.mxu0 0
    %130 = vmatpush1.bf16.msra.mxu0 0
    %131 = vmatprep.subr.bf16.mxu0 0
    %132 = vmatpush1.bf16.msra.mxu0 %v114
    %133 = vmatprep.subr.bf16.mxu0 0
    %134 = vmatpush1.bf16.msra.mxu0 %v113
    %135 = vmatprep.subr.bf16.mxu0 0
    %136 = vmatpush1.bf16.msra.mxu0 %v112
    %137 = vmatprep.subr.bf16.mxu0 0
    %138 = vmatpush1.bf16.msra.mxu0 %v111
    %139 = vmatprep.subr.bf16.mxu0 0
    %140 = vmatpush2.bf16.msra.mxu0 0
    %141 = vmatprep.subr.bf16.mxu0 0
    %142 = vmatpush2.bf16.msra.mxu0 0
    %143 = vmatprep.subr.bf16.mxu0 0
    %144 = vmatpush2.bf16.msra.mxu0 0
    %145 = vmatprep.subr.bf16.mxu0 0
    %146 = vmatpush2.bf16.msra.mxu0 0
    %147 = vmatprep.subr.bf16.mxu0 0
    %148 = vmatpush2.bf16.msra.mxu0 0
    %149 = vmatprep.subr.bf16.mxu0 0
    %150 = vmatpush2.bf16.msra.mxu0 0
    %151 = vmatprep.subr.bf16.mxu0 0
    %152 = vmatpush2.bf16.msra.mxu0 0
    %153 = vmatprep.subr.bf16.mxu0 0
    %154 = vmatpush2.bf16.msra.mxu0 0
    %155 = vmatprep.mubr.bf16.mxu0 0
    %156 = vmatmul.mubr.bf16.gmra.mxu0 %v121
    %v157 = vpop.f32.mrf.mxu0
    %v158 = vadd.f32 %v93, %v157
    %v159 = vpop.f32.mrf.mxu0
    %v160 = vpop.f32.mrf.mxu0
    %v161 = vpop.f32.mrf.mxu0
    %162 = vdwg.mxu0
    %v163 = vmax.f32 %v158, 0.0
    %v164 = vpack.c.bf16 %v163, %v163
    %v165 = vld [vmem:[#allocation7] sm:$0xf]
    %v166 = vld [vmem:[#allocation7 + $0x4] sm:$0xf]
    %v167 = vld [vmem:[#allocation7 + $0x8] sm:$0xf]
    %v168 = vld [vmem:[#allocation7 + $0xc] sm:$0xf]
    %v169 = vld [vmem:[#allocation7 + $0x10] sm:$0xf]
    %v170 = vld [vmem:[#allocation7 + $0x14] sm:$0xf]
    %v171 = vld [vmem:[#allocation7 + $0x18] sm:$0xf]
    %v172 = vld [vmem:[#allocation7 + $0x1c] sm:$0xf]
    %v173 = vld [vmem:[#allocation7 + $0x20] sm:$0xf]
    %v174 = vld [vmem:[#allocation7 + $0x24] sm:$0xf]
    %v175 = vld [vmem:[#allocation7 + $0x28] sm:$0xf]
    %v176 = vld [vmem:[#allocation7 + $0x2c] sm:$0xf]
    %v177 = vld [vmem:[#allocation7 + $0x30] sm:$0xf]
    %v178 = vld [vmem:[#allocation7 + $0x34] sm:$0xf]
    %v179 = vld [vmem:[#allocation7 + $0x38] sm:$0xf]
    %v180 = vld [vmem:[#allocation7 + $0x3c] sm:$0xf]
    %v181 = vld [vmem:[%s4] sm:$0x1]
    %v183 = vlaneseq
    %v184 = vshrl.u32 %v183, 7
    %v185 = vsub.s32 0, %v184
    %v186 = vrot.slane %v181, %v185
    %v204 = vunpack.c.l.b16 %v165
    %v205 = vunpack.c.l.b16 %v166
    %v206 = vunpack.c.l.b16 %v167
    %v207 = vunpack.c.l.b16 %v168
    %v208 = vunpack.c.l.b16 %v169
    %v209 = vunpack.c.l.b16 %v170
    %v210 = vunpack.c.l.b16 %v171
    %v211 = vunpack.c.l.b16 %v172
    %v212 = vunpack.c.l.b16 %v173
    %v213 = vunpack.c.l.b16 %v174
    %v214 = vunpack.c.l.b16 %v175
    %v215 = vunpack.c.l.b16 %v176
    %v216 = vunpack.c.l.b16 %v177
    %v217 = vunpack.c.l.b16 %v178
    %v218 = vunpack.c.l.b16 %v179
    %v219 = vunpack.c.l.b16 %v180
    %v220 = vpack.c.b16 %v205, %v204
    %v221 = vpack.c.b16 %v207, %v206
    %v222 = vpack.c.b16 %v209, %v208
    %v223 = vpack.c.b16 %v211, %v210
    %v224 = vpack.c.b16 %v213, %v212
    %v225 = vpack.c.b16 %v215, %v214
    %v226 = vpack.c.b16 %v217, %v216
    %v227 = vpack.c.b16 %v219, %v218
    %236 = vmatprep.subr.bf16.mxu0 0
    %237 = vmatpush1.bf16.msra.mxu0 %v227
    %238 = vmatprep.subr.bf16.mxu0 0
    %239 = vmatpush1.bf16.msra.mxu0 %v226
    %240 = vmatprep.subr.bf16.mxu0 0
    %241 = vmatpush1.bf16.msra.mxu0 %v225
    %242 = vmatprep.subr.bf16.mxu0 0
    %243 = vmatpush1.bf16.msra.mxu0 %v224
    %244 = vmatprep.subr.bf16.mxu0 0
    %245 = vmatpush1.bf16.msra.mxu0 %v223
    %246 = vmatprep.subr.bf16.mxu0 0
    %247 = vmatpush1.bf16.msra.mxu0 %v222
    %248 = vmatprep.subr.bf16.mxu0 0
    %249 = vmatpush1.bf16.msra.mxu0 %v221
    %250 = vmatprep.subr.bf16.mxu0 0
    %251 = vmatpush1.bf16.msra.mxu0 %v220
    %252 = vmatprep.subr.bf16.mxu0 0
    %253 = vmatpush2.bf16.msra.mxu0 0
    %254 = vmatprep.subr.bf16.mxu0 0
    %255 = vmatpush2.bf16.msra.mxu0 0
    %256 = vmatprep.subr.bf16.mxu0 0
    %257 = vmatpush2.bf16.msra.mxu0 0
    %258 = vmatprep.subr.bf16.mxu0 0
    %259 = vmatpush2.bf16.msra.mxu0 0
    %260 = vmatprep.subr.bf16.mxu0 0
    %261 = vmatpush2.bf16.msra.mxu0 0
    %262 = vmatprep.subr.bf16.mxu0 0
    %263 = vmatpush2.bf16.msra.mxu0 0
    %264 = vmatprep.subr.bf16.mxu0 0
    %265 = vmatpush2.bf16.msra.mxu0 0
    %266 = vmatprep.subr.bf16.mxu0 0
    %267 = vmatpush2.bf16.msra.mxu0 0
    %268 = vmatprep.mubr.bf16.mxu0 0
    %269 = vmatmul.mubr.bf16.gmra.mxu0 %v164
    %v270 = vpop.f32.mrf.mxu0
    %v271 = vadd.f32 %v186, %v270
    %v272 = vpop.f32.mrf.mxu0
    %v273 = vpop.f32.mrf.mxu0
    %v274 = vpop.f32.mrf.mxu0
    %275 = vdwg.mxu0
    %276 = vmax.xlane.f32.xlu0 %v271
    %v277 = vpop.xlane.xlu0 %276
    %v278 = vsub.f32 %v271, %v277
    %v279 = vmul.f32 %v278, 1.442695
    %v280 = vpow.pop %v279
    %281 = vadd.xlane.f32.xlu0 %v280
    %v282 = vpop.xlane.xlu0 %281
    %v283 = vrcp.pop %v282
    %v284 = vmul.f32 %v280, %v283
    %v285 = vld [vmem:[#allocation8] sm:$0xff]
    %v286 = vld [vmem:[#allocation8 + $0x8] sm:$0xff]
    %v287 = vld [vmem:[#allocation8 + $0x10] sm:$0xff]
    %v288 = vld [vmem:[#allocation8 + $0x18] sm:$0xff]
    %v289 = vld [vmem:[#allocation8 + $0x20] sm:$0xff]
    %v290 = vld [vmem:[#allocation8 + $0x28] sm:$0xff]
    %v291 = vld [vmem:[#allocation8 + $0x30] sm:$0xff]
    %v292 = vld [vmem:[#allocation8 + $0x38] sm:$0xff]
    %v293 = vld [vmem:[#allocation8 + $0x40] sm:$0xff]
    %v294 = vld [vmem:[#allocation8 + $0x48] sm:$0xff]
    %v295 = vld [vmem:[#allocation8 + $0x50] sm:$0xff]
    %v296 = vld [vmem:[#allocation8 + $0x58] sm:$0xff]
    %v297 = vld [vmem:[#allocation8 + $0x60] sm:$0xff]
    %v298 = vld [vmem:[#allocation8 + $0x68] sm:$0xff]
    %v299 = vld [vmem:[#allocation8 + $0x70] sm:$0xff]
    %v300 = vld [vmem:[#allocation8 + $0x78] sm:$0xff]
    %301 = vmatprep.subr.mxu0 0.0
    %302 = vmatpush1.msra.mxu0 %v300
    %303 = vmatprep.subr.mxu0 0.0
    %304 = vmatpush1.msra.mxu0 %v299
    %305 = vmatprep.subr.mxu0 0.0
    %306 = vmatpush1.msra.mxu0 %v298
    %307 = vmatprep.subr.mxu0 0.0
    %308 = vmatpush1.msra.mxu0 %v297
    %309 = vmatprep.subr.mxu0 0.0
    %310 = vmatpush1.msra.mxu0 %v296
    %311 = vmatprep.subr.mxu0 0.0
    %312 = vmatpush1.msra.mxu0 %v295
    %313 = vmatprep.subr.mxu0 0.0
    %314 = vmatpush1.msra.mxu0 %v294
    %315 = vmatprep.subr.mxu0 0.0
    %316 = vmatpush1.msra.mxu0 %v293
    %317 = vmatprep.subr.mxu0 0.0
    %318 = vmatpush1.msra.mxu0 %v292
    %319 = vmatprep.subr.mxu0 0.0
    %320 = vmatpush1.msra.mxu0 %v291
    %321 = vmatprep.subr.mxu0 0.0
    %322 = vmatpush1.msra.mxu0 %v290
    %323 = vmatprep.subr.mxu0 0.0
    %324 = vmatpush1.msra.mxu0 %v289
    %325 = vmatprep.subr.mxu0 0.0
    %326 = vmatpush1.msra.mxu0 %v288
    %327 = vmatprep.subr.mxu0 0.0
    %328 = vmatpush1.msra.mxu0 %v287
    %329 = vmatprep.subr.mxu0 0.0
    %330 = vmatpush1.msra.mxu0 %v286
    %331 = vmatprep.subr.mxu0 0.0
    %332 = vmatpush1.msra.mxu0 %v285
    %333 = vmatprep.subr.mxu0 0.0
    %334 = vmatpush2.msra.mxu0 0.0
    %335 = vmatprep.subr.mxu0 0.0
    %336 = vmatpush2.msra.mxu0 0.0
    %337 = vmatprep.subr.mxu0 0.0
    %338 = vmatpush2.msra.mxu0 0.0
    %339 = vmatprep.subr.mxu0 0.0
    %340 = vmatpush2.msra.mxu0 0.0
    %341 = vmatprep.subr.mxu0 0.0
    %342 = vmatpush2.msra.mxu0 0.0
    %343 = vmatprep.subr.mxu0 0.0
    %344 = vmatpush2.msra.mxu0 0.0
    %345 = vmatprep.subr.mxu0 0.0
    %346 = vmatpush2.msra.mxu0 0.0
    %347 = vmatprep.subr.mxu0 0.0
    %348 = vmatpush2.msra.mxu0 0.0
    %349 = vmatprep.subr.mxu0 0.0
    %350 = vmatpush2.msra.mxu0 0.0
    %351 = vmatprep.subr.mxu0 0.0
    %352 = vmatpush2.msra.mxu0 0.0
    %353 = vmatprep.subr.mxu0 0.0
    %354 = vmatpush2.msra.mxu0 0.0
    %355 = vmatprep.subr.mxu0 0.0
    %356 = vmatpush2.msra.mxu0 0.0
    %357 = vmatprep.subr.mxu0 0.0
    %358 = vmatpush2.msra.mxu0 0.0
    %359 = vmatprep.subr.mxu0 0.0
    %360 = vmatpush2.msra.mxu0 0.0
    %361 = vmatprep.subr.mxu0 0.0
    %362 = vmatpush2.msra.mxu0 0.0
    %363 = vmatprep.subr.mxu0 0.0
    %364 = vmatpush2.msra.mxu0 0.0
    %365 = vmatprep.mubr.f32.mxu0 0.0
    %366 = vmatmul.mubr.f32.gmra.mxu0 %v284
    %v367 = vpop.f32.mrf.mxu0
    %v368 = vadd.f32 0.0, %v367
    %v369 = vpop.f32.mrf.mxu0
    %370 = vdwg.mxu0
    %371 = vst [vmem:[#allocation10] sm:$0xff] %v368
    // Predicated region
    $region42: #{tpu_custom_call.1} parent=1 // pred_check
      _
    $region43: #{tpu_custom_call.1} parent=1 // pred_check_branch
      %373 = sbr.rel (0) target = $region45
    $region44: #{tpu_custom_call.1} parent=1 // pred_region
      %s375 = ssub.s32 128, 128
      %376 = vsyncadd [#allocation4], %s375
      %s378 = sshll.u32 [#allocation10], 4
      %s379 = int_to_ptr.vmem [resolvable:$true] %s378
      %381 = dma.vmem_to_hbm [thread:$0]  %s379, 128, %s6, [#allocation4]
    $region45: #{tpu_custom_call.1} parent=1 // pred_fallthru
      _
    // Predicated region
    $region46: #{tpu_custom_call.1} parent=1 // pred_check
      _
    $region47: #{tpu_custom_call.1} parent=1 // pred_check_branch
      %383 = sbr.rel (0) target = $region49
    $region48: #{tpu_custom_call.1} parent=1 // pred_region
      %384 = dma.done [#allocation4], 128
    $region49: #{tpu_custom_call.1} parent=1 // pred_fallthru
      _
    %385 = vsyncpa [#allocation3], 1
    %386 = vsyncpa [#allocation6], 1
    %387 = vsyncpa [#allocation9], 1
    %388 = vsyncpa [#allocation4], 1

</llo_original>
